<compile_context>
chip_gen: v7x
topology: tpu7x:2x2x1
jax: 0.10.0
libtpu: 0.0.40
codegen_flags: <defaults>
</compile_context>

<pallas_src>
import jax
import jax.numpy as jnp
from jax.experimental import pallas as pl
from jax.experimental.pallas import tpu as pltpu

IN_FEATURES = 100
OUT_FEATURES = 50
TILE_M_MAX = 8192       # largest batch tile; stays well inside scoped VMEM
SINGLE_SHOT_MAX = 1024  # below this, skip the grid (pipeline overhead > work)


def _linear_sigmoid_kernel(x_ref, w_ref, b_ref, o_ref):
    # x_ref: [M, 100], w_ref: [100, 50], b_ref: [1, 50], o_ref: [M, 50]
    logits = jnp.dot(x_ref[...], w_ref[...],
                     preferred_element_type=jnp.float32) + b_ref[...]
    o_ref[...] = jax.nn.sigmoid(logits).astype(o_ref.dtype)


def prepare_params(weight, bias):
    """One-time parameter prep (do NOT call per forward pass).

    weight: [50, 100] (PyTorch nn.Linear layout), bias: [50].
    Returns w_t [100, 50] in x@W layout and b_row [1, 50]. No padding needed:
    Mosaic lane-pads the 100-wide / 50-wide tiles in VMEM for free.
    """
    w_t = jnp.asarray(weight, jnp.float32).T                      # [100, 50]
    b_row = jnp.asarray(bias, jnp.float32).reshape(1, OUT_FEATURES)
    return w_t, b_row


def _round_up(n, m):
    return ((n + m - 1) // m) * m


def _cost(batch, x_itemsize):
    # Scaled from the true 100/50 dims, not the internal lane-padded ones.
    return pl.CostEstimate(
        flops=2 * batch * IN_FEATURES * OUT_FEATURES,
        transcendentals=batch * OUT_FEATURES,
        bytes_accessed=(batch * IN_FEATURES * x_itemsize
                        + 4 * (IN_FEATURES * OUT_FEATURES
                               + OUT_FEATURES
                               + batch * OUT_FEATURES)),
    )


@jax.jit
def emotional_system(x, w_t, b_row):
    """x: [B, 100] (f32, or bf16 if the producer already has bf16).
    w_t/b_row from prepare_params(). Returns [B, 50] float32."""
    B = x.shape[0]

    if B <= SINGLE_SHOT_MAX:
        # Small batch: single shot, whole arrays resident in VMEM,
        # no pipeline prologue/epilogue machinery.
        return pl.pallas_call(
            _linear_sigmoid_kernel,
            out_shape=jax.ShapeDtypeStruct((B, OUT_FEATURES), jnp.float32),
            in_specs=[
                pl.BlockSpec(memory_space=pltpu.MemorySpace.VMEM),
                pl.BlockSpec(memory_space=pltpu.MemorySpace.VMEM),
                pl.BlockSpec(memory_space=pltpu.MemorySpace.VMEM),
            ],
            out_specs=pl.BlockSpec(memory_space=pltpu.MemorySpace.VMEM),
            cost_estimate=_cost(B, x.dtype.itemsize),
        )(x, w_t, b_row)

    # Large batch: tile the batch axis and shard it across TensorCores.
    if B <= 2 * TILE_M_MAX:
        # Guarantee >= 2 tiles so v7x's two TCs both get work.
        tile_m = _round_up(-(-B // 2), 8)
    else:
        tile_m = TILE_M_MAX
    grid = (-(-B // tile_m),)

    return pl.pallas_call(
        _linear_sigmoid_kernel,
        out_shape=jax.ShapeDtypeStruct((B, OUT_FEATURES), jnp.float32),
        grid=grid,
        in_specs=[
            pl.BlockSpec((tile_m, IN_FEATURES), lambda i: (i, 0)),
            pl.BlockSpec((IN_FEATURES, OUT_FEATURES), lambda i: (0, 0)),
            pl.BlockSpec((1, OUT_FEATURES), lambda i: (0, 0)),
        ],
        out_specs=pl.BlockSpec((tile_m, OUT_FEATURES), lambda i: (i, 0)),
        compiler_params=pltpu.CompilerParams(
            dimension_semantics=("parallel",),
        ),
        cost_estimate=_cost(B, x.dtype.itemsize),
    )(x, w_t, b_row)


def init_params(key):
    # Deterministic init mimicking nn.Linear's uniform(-1/sqrt(in), 1/sqrt(in)).
    kw, kb = jax.random.split(key)
    bound = 1.0 / jnp.sqrt(jnp.float32(IN_FEATURES))
    weight = jax.random.uniform(
        kw, (OUT_FEATURES, IN_FEATURES), jnp.float32, -bound, bound
    )
    bias = jax.random.uniform(kb, (OUT_FEATURES,), jnp.float32, -bound, bound)
    return weight, bias


if __name__ == "__main__":
    key = jax.random.PRNGKey(0)
    k_x, k_x2, k_p = jax.random.split(key, 3)

    weight, bias = init_params(k_p)
    w_t, b_row = prepare_params(weight, bias)   # one-time prep

    # Small-batch (single-shot) path.
    B = 8
    x = jax.random.normal(k_x, (B, IN_FEATURES), jnp.float32)
    out = jax.block_until_ready(emotional_system(x, w_t, b_row))
    ref = jax.nn.sigmoid(x @ weight.T + bias)
    assert out.shape == (B, OUT_FEATURES)
    assert jnp.allclose(out, ref, atol=1e-5, rtol=1e-5)

    # Gridded path (ragged last block exercised: 1050 = 2 tiles of 528).
    B2 = 1050
    x2 = jax.random.normal(k_x2, (B2, IN_FEATURES), jnp.float32)
    out2 = jax.block_until_ready(emotional_system(x2, w_t, b_row))
    ref2 = jax.nn.sigmoid(x2 @ weight.T + bias)
    assert out2.shape == (B2, OUT_FEATURES)
    assert jnp.allclose(out2, ref2, atol=1e-5, rtol=1e-5)

    print("KERNEL_OK")
</pallas_src>

<mosaic_0001>
module attributes {stable_mosaic.version = 11 : i64} {
  func.func @_linear_sigmoid_kernel(%arg0: memref<8x100xf32, #tpu.memory_space<vmem>>, %arg1: memref<100x50xf32, #tpu.memory_space<vmem>>, %arg2: memref<1x50xf32, #tpu.memory_space<vmem>>, %arg3: memref<8x50xf32, #tpu.memory_space<vmem>>) attributes {dimension_semantics = [], scalar_prefetch = 0 : i64, scratch_operands = 0 : i64, tpu.core_type = #tpu.core_type<tc>} {
    %c0 = arith.constant 0 : index
    %c0_0 = arith.constant 0 : index
    %0 = vector.load %arg0[%c0, %c0_0] : memref<8x100xf32, #tpu.memory_space<vmem>>, vector<8x100xf32>
    %c0_1 = arith.constant 0 : index
    %c0_2 = arith.constant 0 : index
    %1 = vector.load %arg1[%c0_1, %c0_2] : memref<100x50xf32, #tpu.memory_space<vmem>>, vector<100x50xf32>
    %cst = arith.constant dense<0.000000e+00> : vector<8x50xf32>
    %2 = tpu.matmul %0, %1, %cst {dimension_numbers = #tpu.dot_dimension_numbers<[1], [0], [0], [1], [0, 0, 1, 1], [], []>} : vector<8x100xf32>, vector<100x50xf32>, vector<8x50xf32> -> vector<8x50xf32>
    %c0_3 = arith.constant 0 : index
    %c0_4 = arith.constant 0 : index
    %3 = vector.load %arg2[%c0_3, %c0_4] : memref<1x50xf32, #tpu.memory_space<vmem>>, vector<1x50xf32>
    %4 = vector.broadcast %3 : vector<1x50xf32> to vector<8x50xf32>
    %5 = arith.addf %2, %4 : vector<8x50xf32>
    %6 = arith.negf %5 : vector<8x50xf32>
    %7 = math.exp %6 : vector<8x50xf32>
    %cst_5 = arith.constant 1.000000e+00 : f32
    %8 = vector.broadcast %cst_5 : f32 to vector<8x50xf32>
    %9 = arith.addf %8, %7 : vector<8x50xf32>
    %10 = arith.divf %8, %9 : vector<8x50xf32>
    %c0_6 = arith.constant 0 : index
    %c0_7 = arith.constant 0 : index
    %11 = vector.load %arg3[%c0_6, %c0_7] : memref<8x50xf32, #tpu.memory_space<vmem>>, vector<8x50xf32>
    tpu.vector_store %arg3[%c0_6, %c0_7], %10 {strides = array<i32>} : memref<8x50xf32, #tpu.memory_space<vmem>>, vector<8x50xf32>,
    return
  }
}

</mosaic_0001>

<llo_original>
// kernel: emotional_system.1
$region0: #{emotional_system.1}
  #allocation0 [shape = 'u32[]', space=smem, size = 0x4, offset = 0x4, fixed_abs, tag = 'smem constant byte address 0x4 - core index']
  #allocation1 [shape = 'u32[144,128]{1,0:T(1,128)}', space=vmem, size = 0x12000, scoped, tag = 'internal scratch']
  %s0 = inlined_call_operand.vmem [shape: f32[8,100], index: 0, kind: input, shape index: {}]
  %s1 = inlined_call_operand.vmem [shape: f32[100,50], index: 1, kind: input, shape index: {}]
  %s2 = inlined_call_operand.vmem [shape: f32[1,50], index: 2, kind: input, shape index: {}]
  %s3 = inlined_call_operand.hbm [shape: f32[8,50], index: 3, kind: output, shape index: {}]
  %s4 = sld [smem:[#allocation0]]
  $region22: #{emotional_system.1} parent=0
    _
  %s6 = ssub.s32 1, %s4
  %s7 = scalar_select 0, %s6, %s4
  $region1: #{emotional_system.1} parent=0
    #allocation2 [shape = 'u8[4096]{0}', space=vmem, size = 0x1000, scoped, tag = 'output window, operand 0, single buffered']
    #allocation3 [shape = 's32[1]{0}', space=sflag, size = 0x4, scoped, tag = 'scoped memory for emotional_system.1']
    %8 = vsyncpa [#allocation3], 0
    // Predicated region
    $region2: #{emotional_system.1} parent=1 // pred_check
      _
    $region3: #{emotional_system.1} parent=1 // pred_check_branch
      %10 = sbr.rel (0) target = $region5
    $region4: #{emotional_system.1} parent=1 // pred_region
      _
    $region5: #{emotional_system.1} parent=1 // pred_fallthru
      _
    // Predicated region
    $region6: #{emotional_system.1} parent=1 // pred_check
      _
    $region7: #{emotional_system.1} parent=1 // pred_check_branch
      %12 = sbr.rel (0) target = $region9
    $region8: #{emotional_system.1} parent=1 // pred_region
      _
    $region9: #{emotional_system.1} parent=1 // pred_fallthru
      _
    // Predicated region
    $region10: #{emotional_system.1} parent=1 // pred_check
      _
    $region11: #{emotional_system.1} parent=1 // pred_check_branch
      %14 = sbr.rel (0) target = $region13
    $region12: #{emotional_system.1} parent=1 // pred_region
      _
    $region13: #{emotional_system.1} parent=1 // pred_fallthru
      _
    %v15 = vld [vmem:[%s0] sm:$0xff]
    %v16 = vld [vmem:[%s1] sm:$0xff]
    %v17 = vld [vmem:[%s1 + $0x8] sm:$0xff]
    %v18 = vld [vmem:[%s1 + $0x10] sm:$0xff]
    %v19 = vld [vmem:[%s1 + $0x18] sm:$0xff]
    %v20 = vld [vmem:[%s1 + $0x20] sm:$0xff]
    %v21 = vld [vmem:[%s1 + $0x28] sm:$0xff]
    %v22 = vld [vmem:[%s1 + $0x30] sm:$0xff]
    %v23 = vld [vmem:[%s1 + $0x38] sm:$0xff]
    %v24 = vld [vmem:[%s1 + $0x40] sm:$0xff]
    %v25 = vld [vmem:[%s1 + $0x48] sm:$0xff]
    %v26 = vld [vmem:[%s1 + $0x50] sm:$0xff]
    %v27 = vld [vmem:[%s1 + $0x58] sm:$0xff]
    %v28 = vld [vmem:[%s1 + $0x60] sm:$0xf]
    %v29 = vld [vmem:[%s2] sm:$0x1]
    %v31 = vlaneseq
    %v32 = vshrl.u32 %v31, 7
    %v33 = vsub.s32 0, %v32
    %v34 = vrot.slane %v29, %v33
    %vm36 = vcmask 818176
    %v38 = vsel %vm36, %v15, 0
    %vm40 = vcmask 1043456
    %v42 = vsel %vm40, %v28, 0
    %44 = vmatprep.subr.mxu0 0.0
    %45 = vmatpush1.msra.mxu0 %v16
    %46 = vmatprep.subr.mxu0 0.0
    %47 = vmatpush1.msra.mxu0 %v17
    %48 = vmatprep.subr.mxu0 0.0
    %49 = vmatpush1.msra.mxu0 %v18
    %50 = vmatprep.subr.mxu0 0.0
    %51 = vmatpush1.msra.mxu0 %v19
    %52 = vmatprep.subr.mxu0 0.0
    %53 = vmatpush1.msra.mxu0 %v20
    %54 = vmatprep.subr.mxu0 0.0
    %55 = vmatpush1.msra.mxu0 %v21
    %56 = vmatprep.subr.mxu0 0.0
    %57 = vmatpush1.msra.mxu0 %v22
    %58 = vmatprep.subr.mxu0 0.0
    %59 = vmatpush1.msra.mxu0 %v23
    %60 = vmatprep.subr.mxu0 0.0
    %61 = vmatpush1.msra.mxu0 %v24
    %62 = vmatprep.subr.mxu0 0.0
    %63 = vmatpush1.msra.mxu0 %v25
    %64 = vmatprep.subr.mxu0 0.0
    %65 = vmatpush1.msra.mxu0 %v26
    %66 = vmatprep.subr.mxu0 0.0
    %67 = vmatpush1.msra.mxu0 %v27
    %68 = vmatprep.subr.mxu0 0.0
    %69 = vmatpush1.msra.mxu0 %v42
    %70 = vmatprep.subr.mxu0 0.0
    %71 = vmatpush1.msra.mxu0 0.0
    %72 = vmatprep.subr.mxu0 0.0
    %73 = vmatpush1.msra.mxu0 0.0
    %74 = vmatprep.subr.mxu0 0.0
    %75 = vmatpush1.msra.mxu0 0.0
    %76 = vmatprep.subr.mxu0 0.0
    %77 = vmatpush1.msra.mxu0 0.0
    %78 = vmatprep.subr.mxu0 0.0
    %79 = vmatpush1.msra.mxu0 0.0
    %80 = vmatprep.subr.mxu0 0.0
    %81 = vmatpush1.msra.mxu0 0.0
    %82 = vmatprep.subr.mxu0 0.0
    %83 = vmatpush1.msra.mxu0 0.0
    %84 = vmatprep.subr.mxu0 0.0
    %85 = vmatpush1.msra.mxu0 0.0
    %86 = vmatprep.subr.mxu0 0.0
    %87 = vmatpush1.msra.mxu0 0.0
    %88 = vmatprep.subr.mxu0 0.0
    %89 = vmatpush1.msra.mxu0 0.0
    %90 = vmatprep.subr.mxu0 0.0
    %91 = vmatpush1.msra.mxu0 0.0
    %92 = vmatprep.subr.mxu0 0.0
    %93 = vmatpush1.msra.mxu0 0.0
    %94 = vmatprep.subr.mxu0 0.0
    %95 = vmatpush1.msra.mxu0 0.0
    %96 = vmatprep.subr.mxu0 0.0
    %97 = vmatpush1.msra.mxu0 0.0
    %98 = vmatprep.subr.mxu0 0.0
    %99 = vmatpush1.msra.mxu0 0.0
    %100 = vmatprep.subr.mxu0 0.0
    %101 = vmatpush1.msra.mxu0 0.0
    %102 = vmatprep.subr.mxu0 0.0
    %103 = vmatpush1.msra.mxu0 0.0
    %104 = vmatprep.subr.mxu0 0.0
    %105 = vmatpush1.msra.mxu0 0.0
    %106 = vmatprep.subr.mxu0 0.0
    %107 = vmatpush1.msra.mxu0 0.0
    %108 = vmatprep.mubr.f32.mxu0 0.0
    %109 = vmatmul.mubr.f32.gmra.mrb[0].mxu0 %v38
    %v110 = vpop.f32.mrb[0].mxu0
    %v111 = vadd.f32 %v34, %v110
    %v112 = vpop.f32.mrb[0].mxu0
    %113 = vdwg.mxu0
    %v114 = vxor.u32 %v111, 2147483648
    %v115 = vmul.f32 %v114, 1.442695
    %v116 = vpow.pop %v115
    %v117 = vadd.f32 %v116, 1.0
    %v118 = vrcp.pop %v117
    %v119 = vmul.f32 1.0, %v118
    %vm120 = vcmask 408576
    %121 = vst.msk [vmem:[#allocation2] sm:$0xff] %vm120, %v119
    // Predicated region
    $region14: #{emotional_system.1} parent=1 // pred_check
      _
    $region15: #{emotional_system.1} parent=1 // pred_check_branch
      %123 = sbr.rel (0) target = $region17
    $region16: #{emotional_system.1} parent=1 // pred_region
      %s125 = ssub.s32 128, 128
      %126 = vsyncadd [#allocation3], %s125
      %s128 = sshll.u32 [#allocation2], 4
      %s129 = int_to_ptr.vmem [resolvable:$true] %s128
      %131 = dma.vmem_to_hbm [thread:$0]  %s129, 128, %s3, [#allocation3]
    $region17: #{emotional_system.1} parent=1 // pred_fallthru
      _
    // Predicated region
    $region18: #{emotional_system.1} parent=1 // pred_check
      _
    $region19: #{emotional_system.1} parent=1 // pred_check_branch
      %133 = sbr.rel (0) target = $region21
    $region20: #{emotional_system.1} parent=1 // pred_region
      %134 = dma.done [#allocation3], 128
    $region21: #{emotional_system.1} parent=1 // pred_fallthru
      _
    %135 = vsyncpa [#allocation3], 1

</llo_original>
